<compile_context>
chip_gen: v5e
topology: v5e:2x2
jax: 0.10.0
libtpu: 0.0.40
codegen_flags: <defaults>
</compile_context>

<pallas_src>
import functools

import jax
import jax.numpy as jnp
from jax.experimental import pallas as pl
from jax.experimental.pallas import tpu as pltpu

ALPHA = 2.0 / 5.0
BETA = 4.0 / 5.0


def _round_up(x, m):
    return (x + m - 1) // m * m


def _device_kind():
    try:
        return jax.devices()[0].device_kind.lower()
    except Exception:
        return ""


def _vmem_capacity_bytes(device_kind=""):
    cap = 0
    try:
        fn = getattr(pltpu, "get_tpu_info", None)
        if fn is not None:
            cap = int(fn().vmem_capacity_bytes)
    except Exception:
        cap = 0
    if cap <= 0:
        cap = (64 << 20) if ("v7" in device_kind or "7x" in device_kind) else (128 << 20)
    return cap


# ------------------------------- kernel -------------------------------------

def _gru_flow_kernel(
    h_ref, t_ref,
    w_rz_ref, wt_rz_ref, b_rz_ref, gscale_ref,   # fused r|z gate
    whh_ref, wth_ref, bhh_ref,                   # candidate (u) gate
    tscale_ref,                                  # TimeTanh scale
    out_ref,
    *, bf16_eup,
):
    h = h_ref[...]                              # (T, H) f32
    t = t_ref[...]                              # (T, 1) f32
    hd = h.shape[-1]
    eup_dtype = jnp.bfloat16 if bf16_eup else jnp.float32

    # Fused r|z gate: one bf16 MXU pass, f32 accumulation.
    pre_rz = (jnp.dot(h.astype(jnp.bfloat16), w_rz_ref[...],
                      preferred_element_type=jnp.float32)
              + t * wt_rz_ref[...] + b_rz_ref[...])            # (T, 2H) f32
    # One EUP stream for both gates, then one wide VPU scale ([BETA..|ALPHA..]).
    rz = gscale_ref[...] * jax.nn.sigmoid(pre_rz.astype(eup_dtype))
    r = rz[:, :hd]
    z = rz[:, hd:]

    # Candidate gate: u = tanh(lin_hh([r*h, t]))
    pre_u = (jnp.dot((r * h).astype(jnp.bfloat16), whh_ref[...],
                     preferred_element_type=jnp.float32)
             + t * wth_ref[...] + bhh_ref[...])                 # (T, H) f32
    u = jnp.tanh(pre_u.astype(eup_dtype)).astype(jnp.float32)

    # time_net (TimeTanh): tanh(t * scale)
    tnet = jnp.tanh((t * tscale_ref[...]).astype(eup_dtype)).astype(jnp.float32)

    out_ref[...] = h + tnet * (z * (u - h))


# ------------------------- one-time parameter packing -----------------------

def prepare_params(params):
    """Hoisted out of the hot path: fuse r/z gates, cast matmul weights to
    bf16, build the [BETA..|ALPHA..] gate-scale vector."""
    (whr, wtr, bhr, whz, wtz, bhz, whh, wth, bhh, tscale) = params
    H = whh.shape[0]
    w_rz = jnp.concatenate([whr, whz], axis=1).astype(jnp.bfloat16)   # (H, 2H)
    wt_rz = jnp.concatenate([wtr, wtz], axis=1).astype(jnp.float32)   # (1, 2H)
    b_rz = jnp.concatenate([bhr, bhz], axis=1).astype(jnp.float32)    # (1, 2H)
    gscale = jnp.concatenate(
        [jnp.full((1, H), BETA, jnp.float32),
         jnp.full((1, H), ALPHA, jnp.float32)], axis=1)               # (1, 2H)
    return (w_rz, wt_rz, b_rz, gscale,
            whh.astype(jnp.bfloat16),
            wth.astype(jnp.float32), bhh.astype(jnp.float32),
            tscale.astype(jnp.float32))


# ------------------------------- tiling logic -------------------------------

def _choose_row_tile(n_rows, hidden_dim, budget_bytes, device_kind=""):
    # Shrink the row tile as H grows; v5e prefers <=256 (1 vst slot, no bf16 VPU).
    if hidden_dim <= 512:
        max_tile = 512
    elif hidden_dim <= 1024:
        max_tile = 256
    else:
        max_tile = 128
    if "v5" in device_kind:
        max_tile = min(max_tile, 256)

    tile = min(max_tile, _round_up(n_rows, 8))
    # Aim for >= 4 grid steps (>= 2 per TensorCore on v7x) when rows permit,
    # so tile DMA overlaps compute even after megacore sharding.
    if n_rows >= 4 * 8:
        tile = min(tile, max(8, (n_rows // 4) // 8 * 8))

    # Shrink until estimated VMEM footprint fits the budget:
    #   2x bf16 weights (double-buffered) + streamed h/t/out tiles + f32 temps.
    fixed_bytes = 12 * hidden_dim * hidden_dim + (1 << 20)
    per_row_bytes = 56 * hidden_dim + 1024
    while tile > 8 and fixed_bytes + tile * per_row_bytes > budget_bytes:
        tile = max(8, (tile // 2) // 8 * 8)
    return max(8, tile)


# ------------------------------- wrapper ------------------------------------

def gru_flow_block(h, t, prepared_params, *, row_tile=None):
    """h: (B, S, H), t: (B, S, 1) -> (B, S, H).  prepared_params from
    prepare_params()."""
    B, S, H = h.shape
    N = B * S
    (w_rz, wt_rz, b_rz, gscale, whh_bf, wth, bhh, tscale) = prepared_params

    dk = _device_kind()
    cap = _vmem_capacity_bytes(dk)
    budget = int(cap * 0.62)
    if row_tile is None:
        row_tile = _choose_row_tile(N, H, budget, dk)
    row_tile = max(8, (row_tile // 8) * 8)
    grid = (pl.cdiv(N, row_tile),)

    # No activation padding: pure reshapes only.
    h2 = h.reshape(N, H)
    t2 = t.reshape(N, 1)

    # bf16 EUP only where the hardware has it (v6e / v7x).
    bf16_eup = any(tag in dk for tag in ("v6", "v7", "7x"))

    fixed_bytes = 12 * H * H + (1 << 20)
    per_row_bytes = 56 * H + 1024
    vmem_limit = int(min(cap - (4 << 20),
                         max(budget,
                             fixed_bytes + row_tile * per_row_bytes + (4 << 20))))
    vmem_limit = max(vmem_limit, 16 << 20)

    kernel = functools.partial(_gru_flow_kernel, bf16_eup=bf16_eup)

    row_spec = lambda shape: pl.BlockSpec(shape, lambda i: (i, 0))
    const_spec = lambda arr: pl.BlockSpec(arr.shape, lambda i: (0, 0))

    out = pl.pallas_call(
        kernel,
        out_shape=jax.ShapeDtypeStruct((N, H), jnp.float32),
        grid_spec=pltpu.PrefetchScalarGridSpec(
            num_scalar_prefetch=0,
            grid=grid,
            in_specs=[
                row_spec((row_tile, H)),     # h   (last dim = full dim -> legal)
                row_spec((row_tile, 1)),     # t
                const_spec(w_rz),            # (H, 2H) bf16
                const_spec(wt_rz),           # (1, 2H)
                const_spec(b_rz),            # (1, 2H)
                const_spec(gscale),          # (1, 2H)
                const_spec(whh_bf),          # (H, H) bf16
                const_spec(wth),             # (1, H)
                const_spec(bhh),             # (1, H)
                const_spec(tscale),          # (1, H)
            ],
            out_specs=row_spec((row_tile, H)),
        ),
        compiler_params=pltpu.CompilerParams(
            dimension_semantics=("parallel",),
            vmem_limit_bytes=vmem_limit),
    )(h2, t2, w_rz, wt_rz, b_rz, gscale, whh_bf, wth, bhh, tscale)

    return out.reshape(B, S, H)


# ----------------------------- parameter setup (glue) -----------------------

def _spectral_normalize(W, u0, n_iters=5, eps=1e-12):
    """W: (out, in). Divide by largest singular value (power iteration)."""
    u = u0 / (jnp.linalg.norm(u0) + eps)
    for _ in range(n_iters):
        v = W.T @ u
        v = v / (jnp.linalg.norm(v) + eps)
        u = W @ v
        u = u / (jnp.linalg.norm(u) + eps)
    sigma = u @ (W @ v)
    return W / sigma


def init_params(key, hidden_dim):
    H = hidden_dim
    in_dim = H + 1
    keys = jax.random.split(key, 10)
    bound = 1.0 / jnp.sqrt(in_dim)

    def make_linear(kw, kb, ku):
        W = jax.random.uniform(kw, (H, in_dim), jnp.float32, -bound, bound)
        b = jax.random.uniform(kb, (H,), jnp.float32, -bound, bound)
        u0 = jax.random.normal(ku, (H,), jnp.float32)
        W = _spectral_normalize(W, u0, n_iters=5)
        Wh = W[:, :H].T                    # (H, H)  so that h @ Wh
        wt = W[:, H].reshape(1, H)         # (1, H)  time column
        return Wh, wt, b.reshape(1, H)

    whr, wtr, bhr = make_linear(keys[0], keys[1], keys[2])
    whz, wtz, bhz = make_linear(keys[3], keys[4], keys[5])
    whh, wth, bhh = make_linear(keys[6], keys[7], keys[8])
    tscale = jax.random.normal(keys[9], (1, H), jnp.float32)   # TimeTanh scale
    return (whr, wtr, bhr, whz, wtz, bhz, whh, wth, bhh, tscale)


def gru_flow_block_ref(h, t, params):
    """Pure-JAX f32 reference mirroring the PyTorch forward exactly."""
    (whr, wtr, bhr, whz, wtz, bhz, whh, wth, bhh, tscale) = params
    r = BETA * jax.nn.sigmoid(h @ whr + t * wtr + bhr)
    z = ALPHA * jax.nn.sigmoid(h @ whz + t * wtz + bhz)
    u = jnp.tanh((r * h) @ whh + t * wth + bhh)
    res = z * (u - h)
    tnet = jnp.tanh(t * tscale)
    return h + tnet * res


if __name__ == "__main__":
    key = jax.random.PRNGKey(0)
    kh, kt, kp, kh2, kt2, kp2 = jax.random.split(key, 6)

    # Primary small case: B=2, S=8, H=32 (single grid step, H < 128 lane tile).
    B, S, H = 2, 8, 32
    h = jax.random.normal(kh, (B, S, H), jnp.float32)
    t = jax.random.uniform(kt, (B, S, 1), jnp.float32)
    params = init_params(kp, H)
    prepared = prepare_params(params)

    out = jax.block_until_ready(gru_flow_block(h, t, prepared))
    ref = gru_flow_block_ref(h, t, params)
    assert out.shape == (B, S, H)
    # bf16 MXU inputs (+ bf16 EUP on v6e/v7x) -> looser tolerance vs f32 ref.
    assert jnp.allclose(out, ref, atol=3e-2, rtol=3e-2), "mismatch vs reference (H=32)"

    # Secondary case: lane-dense H=128 with a multi-step grid (exercises the
    # constant-index weight reuse across grid steps).
    B2, S2, H2 = 2, 48, 128
    h2 = jax.random.normal(kh2, (B2, S2, H2), jnp.float32)
    t2 = jax.random.uniform(kt2, (B2, S2, 1), jnp.float32)
    params2 = init_params(kp2, H2)
    prepared2 = prepare_params(params2)

    out2 = jax.block_until_ready(gru_flow_block(h2, t2, prepared2))
    ref2 = gru_flow_block_ref(h2, t2, params2)
    assert out2.shape == (B2, S2, H2)
    assert jnp.allclose(out2, ref2, atol=3e-2, rtol=3e-2), "mismatch vs reference (H=128)"

    print("KERNEL_OK")
</pallas_src>

<mosaic_0001>
module attributes {stable_mosaic.version = 11 : i64} {
  func.func @_gru_flow_kernel(%arg0: i32, %arg1: memref<16x32xf32, #tpu.memory_space<vmem>>, %arg2: memref<16x1xf32, #tpu.memory_space<vmem>>, %arg3: memref<32x64xbf16, #tpu.memory_space<vmem>>, %arg4: memref<1x64xf32, #tpu.memory_space<vmem>>, %arg5: memref<1x64xf32, #tpu.memory_space<vmem>>, %arg6: memref<1x64xf32, #tpu.memory_space<vmem>>, %arg7: memref<32x32xbf16, #tpu.memory_space<vmem>>, %arg8: memref<1x32xf32, #tpu.memory_space<vmem>>, %arg9: memref<1x32xf32, #tpu.memory_space<vmem>>, %arg10: memref<1x32xf32, #tpu.memory_space<vmem>>, %arg11: memref<16x32xf32, #tpu.memory_space<vmem>>) attributes {dimension_semantics = [#tpu.dimension_semantics<parallel>], iteration_bounds = array<i64: 1>, scalar_prefetch = 0 : i64, scratch_operands = 0 : i64, tpu.core_type = #tpu.core_type<tc>, window_params = [{transform_indices = @transform_0, window_bounds = array<i64: 16, 32>}, {transform_indices = @transform_1, window_bounds = array<i64: 16, 1>}, {pipeline_mode = #tpu.pipeline_mode<synchronous>, transform_indices = @transform_2, window_bounds = array<i64: 32, 64>}, {pipeline_mode = #tpu.pipeline_mode<synchronous>, transform_indices = @transform_3, window_bounds = array<i64: 1, 64>}, {pipeline_mode = #tpu.pipeline_mode<synchronous>, transform_indices = @transform_4, window_bounds = array<i64: 1, 64>}, {pipeline_mode = #tpu.pipeline_mode<synchronous>, transform_indices = @transform_5, window_bounds = array<i64: 1, 64>}, {pipeline_mode = #tpu.pipeline_mode<synchronous>, transform_indices = @transform_6, window_bounds = array<i64: 32, 32>}, {pipeline_mode = #tpu.pipeline_mode<synchronous>, transform_indices = @transform_7, window_bounds = array<i64: 1, 32>}, {pipeline_mode = #tpu.pipeline_mode<synchronous>, transform_indices = @transform_8, window_bounds = array<i64: 1, 32>}, {pipeline_mode = #tpu.pipeline_mode<synchronous>, transform_indices = @transform_9, window_bounds = array<i64: 1, 32>}, {transform_indices = @transform_10, window_bounds = array<i64: 16, 32>}]} {
    %c0 = arith.constant 0 : index
    %c0_0 = arith.constant 0 : index
    %0 = vector.load %arg1[%c0, %c0_0] : memref<16x32xf32, #tpu.memory_space<vmem>>, vector<16x32xf32>
    %c0_1 = arith.constant 0 : index
    %c0_2 = arith.constant 0 : index
    %1 = vector.load %arg2[%c0_1, %c0_2] : memref<16x1xf32, #tpu.memory_space<vmem>>, vector<16x1xf32>
    %2 = arith.truncf %0 : vector<16x32xf32> to vector<16x32xbf16>
    %c0_3 = arith.constant 0 : index
    %c0_4 = arith.constant 0 : index
    %3 = vector.load %arg3[%c0_3, %c0_4] : memref<32x64xbf16, #tpu.memory_space<vmem>>, vector<32x64xbf16>
    %cst = arith.constant dense<0.000000e+00> : vector<16x64xf32>
    %4 = tpu.matmul %2, %3, %cst {dimension_numbers = #tpu.dot_dimension_numbers<[1], [0], [0], [1], [0, 0, 1, 1], [], []>} : vector<16x32xbf16>, vector<32x64xbf16>, vector<16x64xf32> -> vector<16x64xf32>
    %c0_5 = arith.constant 0 : index
    %c0_6 = arith.constant 0 : index
    %5 = vector.load %arg4[%c0_5, %c0_6] : memref<1x64xf32, #tpu.memory_space<vmem>>, vector<1x64xf32>
    %6 = vector.broadcast %1 : vector<16x1xf32> to vector<16x64xf32>
    %7 = vector.broadcast %5 : vector<1x64xf32> to vector<16x64xf32>
    %8 = arith.mulf %6, %7 : vector<16x64xf32>
    %9 = arith.addf %4, %8 : vector<16x64xf32>
    %c0_7 = arith.constant 0 : index
    %c0_8 = arith.constant 0 : index
    %10 = vector.load %arg5[%c0_7, %c0_8] : memref<1x64xf32, #tpu.memory_space<vmem>>, vector<1x64xf32>
    %11 = vector.broadcast %10 : vector<1x64xf32> to vector<16x64xf32>
    %12 = arith.addf %9, %11 : vector<16x64xf32>
    %c0_9 = arith.constant 0 : index
    %c0_10 = arith.constant 0 : index
    %13 = vector.load %arg6[%c0_9, %c0_10] : memref<1x64xf32, #tpu.memory_space<vmem>>, vector<1x64xf32>
    %14 = arith.negf %12 : vector<16x64xf32>
    %15 = math.exp %14 : vector<16x64xf32>
    %cst_11 = arith.constant 1.000000e+00 : f32
    %16 = vector.broadcast %cst_11 : f32 to vector<16x64xf32>
    %17 = arith.addf %16, %15 : vector<16x64xf32>
    %18 = arith.divf %16, %17 : vector<16x64xf32>
    %19 = vector.broadcast %13 : vector<1x64xf32> to vector<16x64xf32>
    %20 = arith.mulf %19, %18 : vector<16x64xf32>
    %21 = vector.extract_strided_slice %20 {offsets = [0, 0], sizes = [16, 32], strides = [1, 1]} : vector<16x64xf32> to vector<16x32xf32>
    %22 = vector.extract_strided_slice %20 {offsets = [0, 32], sizes = [16, 32], strides = [1, 1]} : vector<16x64xf32> to vector<16x32xf32>
    %23 = arith.mulf %21, %0 : vector<16x32xf32>
    %24 = arith.truncf %23 : vector<16x32xf32> to vector<16x32xbf16>
    %c0_12 = arith.constant 0 : index
    %c0_13 = arith.constant 0 : index
    %25 = vector.load %arg7[%c0_12, %c0_13] : memref<32x32xbf16, #tpu.memory_space<vmem>>, vector<32x32xbf16>
    %cst_14 = arith.constant dense<0.000000e+00> : vector<16x32xf32>
    %26 = tpu.matmul %24, %25, %cst_14 {dimension_numbers = #tpu.dot_dimension_numbers<[1], [0], [0], [1], [0, 0, 1, 1], [], []>} : vector<16x32xbf16>, vector<32x32xbf16>, vector<16x32xf32> -> vector<16x32xf32>
    %c0_15 = arith.constant 0 : index
    %c0_16 = arith.constant 0 : index
    %27 = vector.load %arg8[%c0_15, %c0_16] : memref<1x32xf32, #tpu.memory_space<vmem>>, vector<1x32xf32>
    %28 = vector.broadcast %1 : vector<16x1xf32> to vector<16x32xf32>
    %29 = vector.broadcast %27 : vector<1x32xf32> to vector<16x32xf32>
    %30 = arith.mulf %28, %29 : vector<16x32xf32>
    %31 = arith.addf %26, %30 : vector<16x32xf32>
    %c0_17 = arith.constant 0 : index
    %c0_18 = arith.constant 0 : index
    %32 = vector.load %arg9[%c0_17, %c0_18] : memref<1x32xf32, #tpu.memory_space<vmem>>, vector<1x32xf32>
    %33 = vector.broadcast %32 : vector<1x32xf32> to vector<16x32xf32>
    %34 = arith.addf %31, %33 : vector<16x32xf32>
    %35 = math.tanh %34 : vector<16x32xf32>
    %c0_19 = arith.constant 0 : index
    %c0_20 = arith.constant 0 : index
    %36 = vector.load %arg10[%c0_19, %c0_20] : memref<1x32xf32, #tpu.memory_space<vmem>>, vector<1x32xf32>
    %37 = vector.broadcast %1 : vector<16x1xf32> to vector<16x32xf32>
    %38 = vector.broadcast %36 : vector<1x32xf32> to vector<16x32xf32>
    %39 = arith.mulf %37, %38 : vector<16x32xf32>
    %40 = math.tanh %39 : vector<16x32xf32>
    %41 = arith.subf %35, %0 : vector<16x32xf32>
    %42 = arith.mulf %22, %41 : vector<16x32xf32>
    %43 = arith.mulf %40, %42 : vector<16x32xf32>
    %44 = arith.addf %0, %43 : vector<16x32xf32>
    %c0_21 = arith.constant 0 : index
    %c0_22 = arith.constant 0 : index
    %45 = vector.load %arg11[%c0_21, %c0_22] : memref<16x32xf32, #tpu.memory_space<vmem>>, vector<16x32xf32>
    tpu.vector_store %arg11[%c0_21, %c0_22], %44 {strides = array<i32>} : memref<16x32xf32, #tpu.memory_space<vmem>>, vector<16x32xf32>,
    return
  }
  func.func @transform_0(%arg0: i32) -> (i32, i32) {
    %c0_i32 = arith.constant 0 : i32
    %c0_i32_0 = arith.constant 0 : i32
    return %arg0, %c0_i32 : i32, i32
  }
  func.func @transform_1(%arg0: i32) -> (i32, i32) {
    %c0_i32 = arith.constant 0 : i32
    %c0_i32_0 = arith.constant 0 : i32
    return %arg0, %c0_i32 : i32, i32
  }
  func.func @transform_2(%arg0: i32) -> (i32, i32) {
    %c0_i32 = arith.constant 0 : i32
    %c0_i32_0 = arith.constant 0 : i32
    %c0_i32_1 = arith.constant 0 : i32
    return %c0_i32, %c0_i32_0 : i32, i32
  }
  func.func @transform_3(%arg0: i32) -> (i32, i32) {
    %c0_i32 = arith.constant 0 : i32
    %c0_i32_0 = arith.constant 0 : i32
    %c0_i32_1 = arith.constant 0 : i32
    return %c0_i32, %c0_i32_0 : i32, i32
  }
  func.func @transform_4(%arg0: i32) -> (i32, i32) {
    %c0_i32 = arith.constant 0 : i32
    %c0_i32_0 = arith.constant 0 : i32
    %c0_i32_1 = arith.constant 0 : i32
    return %c0_i32, %c0_i32_0 : i32, i32
  }
  func.func @transform_5(%arg0: i32) -> (i32, i32) {
    %c0_i32 = arith.constant 0 : i32
    %c0_i32_0 = arith.constant 0 : i32
    %c0_i32_1 = arith.constant 0 : i32
    return %c0_i32, %c0_i32_0 : i32, i32
  }
  func.func @transform_6(%arg0: i32) -> (i32, i32) {
    %c0_i32 = arith.constant 0 : i32
    %c0_i32_0 = arith.constant 0 : i32
    %c0_i32_1 = arith.constant 0 : i32
    return %c0_i32, %c0_i32_0 : i32, i32
  }
  func.func @transform_7(%arg0: i32) -> (i32, i32) {
    %c0_i32 = arith.constant 0 : i32
    %c0_i32_0 = arith.constant 0 : i32
    %c0_i32_1 = arith.constant 0 : i32
    return %c0_i32, %c0_i32_0 : i32, i32
  }
  func.func @transform_8(%arg0: i32) -> (i32, i32) {
    %c0_i32 = arith.constant 0 : i32
    %c0_i32_0 = arith.constant 0 : i32
    %c0_i32_1 = arith.constant 0 : i32
    return %c0_i32, %c0_i32_0 : i32, i32
  }
  func.func @transform_9(%arg0: i32) -> (i32, i32) {
    %c0_i32 = arith.constant 0 : i32
    %c0_i32_0 = arith.constant 0 : i32
    %c0_i32_1 = arith.constant 0 : i32
    return %c0_i32, %c0_i32_0 : i32, i32
  }
  func.func @transform_10(%arg0: i32) -> (i32, i32) {
    %c0_i32 = arith.constant 0 : i32
    %c0_i32_0 = arith.constant 0 : i32
    return %arg0, %c0_i32 : i32, i32
  }
}

</mosaic_0001>

<llo_original>
// kernel: tpu_custom_call.1
$region0: #{tpu_custom_call.1}
  #allocation0 [shape = 'u32[]', space=smem, size = 0x4, offset = 0x4, fixed_abs, tag = 'smem constant byte address 0x4 - core index']
  #allocation1 [shape = 'u32[72,128]{1,0:T(1,128)}', space=vmem, size = 0x9000, scoped, tag = 'internal scratch']
  %s0 = inlined_call_operand.vmem [shape: f32[16,32], index: 0, kind: input, shape index: {}]
  %s1 = inlined_call_operand.vmem [shape: f32[16,1], index: 1, kind: input, shape index: {}]
  %s2 = inlined_call_operand.hbm [shape: bf16[32,64], index: 2, kind: input, shape index: {}]
  %s3 = inlined_call_operand.vmem [shape: f32[1,64], index: 3, kind: input, shape index: {}]
  %s4 = inlined_call_operand.vmem [shape: f32[1,64], index: 4, kind: input, shape index: {}]
  %s5 = inlined_call_operand.vmem [shape: f32[1,64], index: 5, kind: input, shape index: {}]
  %s6 = inlined_call_operand.hbm [shape: bf16[32,32], index: 6, kind: input, shape index: {}]
  %s7 = inlined_call_operand.vmem [shape: f32[1,32], index: 7, kind: input, shape index: {}]
  %s8 = inlined_call_operand.vmem [shape: f32[1,32], index: 8, kind: input, shape index: {}]
  %s9 = inlined_call_operand.vmem [shape: f32[1,32], index: 9, kind: input, shape index: {}]
  %s10 = inlined_call_operand.hbm [shape: f32[16,32], index: 10, kind: output, shape index: {}]
  %s11 = sld [smem:[#allocation0]]
  $region58: #{tpu_custom_call.1} parent=0
    _
  %s13 = ssub.s32 1, %s11
  %s14 = scalar_select 0, %s13, %s11
  $region1: #{tpu_custom_call.1} parent=0
    #allocation2 [shape = 'u8[8192]{0}', space=vmem, size = 0x2000, scoped, tag = 'input window, operand 2, single buffered']
    #allocation3 [shape = 's32[1]{0}', space=sflag, size = 0x4, scoped, tag = 'scoped memory for tpu_custom_call.1']
    #allocation4 [shape = 's32[1]{0}', space=sflag, size = 0x4, scoped, tag = 'scoped memory for tpu_custom_call.1']
    #allocation5 [shape = 'u8[8192]{0}', space=vmem, size = 0x2000, scoped, tag = 'input window, operand 6, single buffered']
    #allocation6 [shape = 's32[1]{0}', space=sflag, size = 0x4, scoped, tag = 'scoped memory for tpu_custom_call.1']
    #allocation7 [shape = 'u8[8192]{0}', space=vmem, size = 0x2000, scoped, tag = 'output window, operand 0, single buffered']
    %15 = vsyncpa [#allocation3], 0
    %16 = vsyncpa [#allocation6], 0
    %17 = vsyncpa [#allocation4], 0
    // Predicated region
    $region2: #{tpu_custom_call.1} parent=1 // pred_check
      _
    $region3: #{tpu_custom_call.1} parent=1 // pred_check_branch
      %19 = sbr.rel (0) target = $region5
    $region4: #{tpu_custom_call.1} parent=1 // pred_region
      _
    $region5: #{tpu_custom_call.1} parent=1 // pred_fallthru
      _
    // Predicated region
    $region6: #{tpu_custom_call.1} parent=1 // pred_check
      _
    $region7: #{tpu_custom_call.1} parent=1 // pred_check_branch
      %21 = sbr.rel (0) target = $region9
    $region8: #{tpu_custom_call.1} parent=1 // pred_region
      _
    $region9: #{tpu_custom_call.1} parent=1 // pred_fallthru
      _
    // Predicated region
    $region10: #{tpu_custom_call.1} parent=1 // pred_check
      _
    $region11: #{tpu_custom_call.1} parent=1 // pred_check_branch
      %23 = sbr.rel (0) target = $region13
    $region12: #{tpu_custom_call.1} parent=1 // pred_region
      %25 = vsyncadd [#allocation3], 0
      %s26 = sshll.u32 %s2, 4
      %s27 = int_to_ptr.hbm [resolvable:$true] %s26
      %s28 = sshll.u32 [#allocation2], 4
      %s29 = int_to_ptr.vmem [resolvable:$true] %s28
      %34 = dma.hbm_to_vmem [thread:$0]  %s27, 256, %s29, [#allocation3], 64, 64, 4
    $region13: #{tpu_custom_call.1} parent=1 // pred_fallthru
      _
    // Predicated region
    $region14: #{tpu_custom_call.1} parent=1 // pred_check
      _
    $region15: #{tpu_custom_call.1} parent=1 // pred_check_branch
      %36 = sbr.rel (0) target = $region17
    $region16: #{tpu_custom_call.1} parent=1 // pred_region
      _
    $region17: #{tpu_custom_call.1} parent=1 // pred_fallthru
      _
    // Predicated region
    $region18: #{tpu_custom_call.1} parent=1 // pred_check
      _
    $region19: #{tpu_custom_call.1} parent=1 // pred_check_branch
      %38 = sbr.rel (0) target = $region21
    $region20: #{tpu_custom_call.1} parent=1 // pred_region
      _
    $region21: #{tpu_custom_call.1} parent=1 // pred_fallthru
      _
    // Predicated region
    $region22: #{tpu_custom_call.1} parent=1 // pred_check
      _
    $region23: #{tpu_custom_call.1} parent=1 // pred_check_branch
      %40 = sbr.rel (0) target = $region25
    $region24: #{tpu_custom_call.1} parent=1 // pred_region
      _
    $region25: #{tpu_custom_call.1} parent=1 // pred_fallthru
      _
    // Predicated region
    $region26: #{tpu_custom_call.1} parent=1 // pred_check
      _
    $region27: #{tpu_custom_call.1} parent=1 // pred_check_branch
      %42 = sbr.rel (0) target = $region29
    $region28: #{tpu_custom_call.1} parent=1 // pred_region
      %44 = vsyncadd [#allocation6], 0
      %s45 = sshll.u32 %s6, 4
      %s46 = int_to_ptr.hbm [resolvable:$true] %s45
      %s47 = sshll.u32 [#allocation5], 4
      %s48 = int_to_ptr.vmem [resolvable:$true] %s47
      %53 = dma.hbm_to_vmem [thread:$0]  %s46, 256, %s48, [#allocation6], 64, 64, 4
    $region29: #{tpu_custom_call.1} parent=1 // pred_fallthru
      _
    // Predicated region
    $region30: #{tpu_custom_call.1} parent=1 // pred_check
      _
    $region31: #{tpu_custom_call.1} parent=1 // pred_check_branch
      %55 = sbr.rel (0) target = $region33
    $region32: #{tpu_custom_call.1} parent=1 // pred_region
      _
    $region33: #{tpu_custom_call.1} parent=1 // pred_fallthru
      _
    // Predicated region
    $region34: #{tpu_custom_call.1} parent=1 // pred_check
      _
    $region35: #{tpu_custom_call.1} parent=1 // pred_check_branch
      %57 = sbr.rel (0) target = $region37
    $region36: #{tpu_custom_call.1} parent=1 // pred_region
      _
    $region37: #{tpu_custom_call.1} parent=1 // pred_fallthru
      _
    // Predicated region
    $region38: #{tpu_custom_call.1} parent=1 // pred_check
      _
    $region39: #{tpu_custom_call.1} parent=1 // pred_check_branch
      %59 = sbr.rel (0) target = $region41
    $region40: #{tpu_custom_call.1} parent=1 // pred_region
      _
    $region41: #{tpu_custom_call.1} parent=1 // pred_fallthru
      _
    // Predicated region
    $region42: #{tpu_custom_call.1} parent=1 // pred_check
      _
    $region43: #{tpu_custom_call.1} parent=1 // pred_check_branch
      %61 = sbr.rel (0) target = $region45
    $region44: #{tpu_custom_call.1} parent=1 // pred_region
      %63 = dma.done [#allocation3], 256
    $region45: #{tpu_custom_call.1} parent=1 // pred_fallthru
      _
    // Predicated region
    $region46: #{tpu_custom_call.1} parent=1 // pred_check
      _
    $region47: #{tpu_custom_call.1} parent=1 // pred_check_branch
      %65 = sbr.rel (0) target = $region49
    $region48: #{tpu_custom_call.1} parent=1 // pred_region
      %67 = dma.done [#allocation6], 256
    $region49: #{tpu_custom_call.1} parent=1 // pred_fallthru
      _
    %v69 = vld [vmem:[%s0] sm:$0xff]
    %v70 = vld [vmem:[%s0 + $0x8] sm:$0xff]
    %v71 = vld [vmem:[%s1] sm:$0xff]
    %v72 = vld [vmem:[%s1 + $0x8] sm:$0xff]
    %v73 = vpack.c.bf16 %v70, %v69
    %v74 = vld [vmem:[#allocation2] sm:$0xf]
    %v75 = vld [vmem:[#allocation2 + $0x4] sm:$0xf]
    %v76 = vld [vmem:[#allocation2 + $0x8] sm:$0xf]
    %v77 = vld [vmem:[#allocation2 + $0xc] sm:$0xf]
    %v78 = vld [vmem:[%s3] sm:$0x1]
    %80 = vset.pattern.permute.xlu0 0
    %81 = vperm.xlu0 %80, %v71
    %v82 = vpop.permute.xlu0 %81
    %85 = vset.pattern.permute.xlu0 0
    %86 = vperm.xlu0 %85, %v72
    %v87 = vpop.permute.xlu0 %86
    %v90 = vperm.slane %v78, 0
    %v92 = vmul.f32 %v82, %v90
    %v93 = vmul.f32 %v87, %v90
    %v98 = vunpack.c.l.b16 %v74
    %v99 = vunpack.c.l.b16 %v75
    %v100 = vunpack.c.l.b16 %v76
    %v101 = vunpack.c.l.b16 %v77
    %v102 = vpack.c.b16 %v99, %v98
    %v103 = vpack.c.b16 %v101, %v100
    %vm106 = vcmask 261120
    %v108 = vsel %vm106, %v73, 0
    %110 = vmatpush.bf16.msra.mxu0 0
    %111 = vmatpush.bf16.msra.mxu0 0
    %112 = vmatpush.bf16.msra.mxu0 0
    %113 = vmatpush.bf16.msra.mxu0 0
    %114 = vmatpush.bf16.msra.mxu0 0
    %115 = vmatpush.bf16.msra.mxu0 0
    %116 = vmatpush.bf16.msra.mxu0 %v103
    %117 = vmatpush.bf16.msra.mxu0 %v102
    %118 = vmatmul.bf16.gmra.mxu0 %v108
    %v119 = vpop.f32.mrf.mxu0
    %v120 = vadd.f32 %v92, %v119
    %v121 = vpop.f32.mrf.mxu0
    %v122 = vadd.f32 %v93, %v121
    %123 = vdwg.mxu0
    %v124 = vld [vmem:[%s4] sm:$0x1]
    %v126 = vperm.slane %v124, 0
    %v128 = vadd.f32 %v120, %v126
    %v129 = vadd.f32 %v122, %v126
    %v130 = vld [vmem:[%s5] sm:$0x1]
    %v131 = vxor.u32 %v128, 2147483648
    %v132 = vxor.u32 %v129, 2147483648
    %v133 = vmul.f32 %v131, 1.442695
    %v134 = vpow.pop %v133
    %v135 = vmul.f32 %v132, 1.442695
    %v136 = vpow.pop %v135
    %v137 = vadd.f32 %v134, 1.0
    %v138 = vadd.f32 %v136, 1.0
    %v139 = vrcp.pop %v137
    %v140 = vmul.f32 %v137, %v139
    %v141 = vsub.f32 1.0, %v140
    %v142 = vmul.f32 %v139, %v141
    %v143 = vadd.f32 %v139, %v142
    %vm144 = vweird.f32 %v137
    %vm145 = vweird.f32 %v139
    %vm146 = vmor %vm144, %vm145
    %v147 = vsel %vm146, %v139, %v143
    %v148 = vand.u32 2147483647, %v137
    %vm149 = vcmp.eq.f32.partialorder %v148, 8.507059e+37
    %v150 = vand.u32 %v137, 2147483648
    %v151 = vor.u32 1.1754944e-38, %v150
    %v152 = vsel %vm149, %v151, %v147
    %v153 = vmul.f32 1.0, %v152
    %v154 = vrcp.pop %v138
    %v155 = vmul.f32 %v138, %v154
    %v156 = vsub.f32 1.0, %v155
    %v157 = vmul.f32 %v154, %v156
    %v158 = vadd.f32 %v154, %v157
    %vm159 = vweird.f32 %v138
    %vm160 = vweird.f32 %v154
    %vm161 = vmor %vm159, %vm160
    %v162 = vsel %vm161, %v154, %v158
    %v163 = vand.u32 2147483647, %v138
    %vm164 = vcmp.eq.f32.partialorder %v163, 8.507059e+37
    %v165 = vand.u32 %v138, 2147483648
    %v166 = vor.u32 1.1754944e-38, %v165
    %v167 = vsel %vm164, %v166, %v162
    %v168 = vmul.f32 1.0, %v167
    %v170 = vperm.slane %v130, 0
    %v172 = vmul.f32 %v170, %v153
    %v173 = vmul.f32 %v170, %v168
    %v174 = vmul.f32 %v172, %v69
    %v175 = vmul.f32 %v173, %v70
    %v176 = vpack.c.bf16 %v175, %v174
    %v177 = vld [vmem:[#allocation5] sm:$0xf]
    %v178 = vld [vmem:[#allocation5 + $0x4] sm:$0xf]
    %v179 = vld [vmem:[#allocation5 + $0x8] sm:$0xf]
    %v180 = vld [vmem:[#allocation5 + $0xc] sm:$0xf]
    %v181 = vld [vmem:[%s7] sm:$0x1]
    %v183 = vperm.slane %v181, 0
    %v185 = vmul.f32 %v82, %v183
    %v186 = vmul.f32 %v87, %v183
    %v191 = vunpack.c.l.b16 %v177
    %v192 = vunpack.c.l.b16 %v178
    %v193 = vunpack.c.l.b16 %v179
    %v194 = vunpack.c.l.b16 %v180
    %v195 = vpack.c.b16 %v192, %v191
    %v196 = vpack.c.b16 %v194, %v193
    %v200 = vsel %vm106, %v176, 0
    %202 = vmatpush.bf16.msra.mxu0 0
    %203 = vmatpush.bf16.msra.mxu0 0
    %204 = vmatpush.bf16.msra.mxu0 0
    %205 = vmatpush.bf16.msra.mxu0 0
    %206 = vmatpush.bf16.msra.mxu0 0
    %207 = vmatpush.bf16.msra.mxu0 0
    %208 = vmatpush.bf16.msra.mxu0 %v196
    %209 = vmatpush.bf16.msra.mxu0 %v195
    %210 = vmatmul.bf16.gmra.mxu0 %v200
    %v211 = vpop.f32.mrf.mxu0
    %v212 = vadd.f32 %v185, %v211
    %v213 = vpop.f32.mrf.mxu0
    %v214 = vadd.f32 %v186, %v213
    %215 = vdwg.mxu0
    %v216 = vld [vmem:[%s8] sm:$0x1]
    %v218 = vperm.slane %v216, 0
    %v220 = vadd.f32 %v212, %v218
    %v221 = vadd.f32 %v214, %v218
    %v222 = vtanh.pop %v220
    %v223 = vtanh.pop %v221
    %v224 = vld [vmem:[%s9] sm:$0x1]
    %v226 = vperm.slane %v224, 0
    %v228 = vmul.f32 %v82, %v226
    %v229 = vmul.f32 %v87, %v226
    %v230 = vtanh.pop %v228
    %v231 = vtanh.pop %v229
    %v232 = vsub.f32 %v222, %v69
    %v233 = vsub.f32 %v223, %v70
    %236 = vrot.lane.b32.xlu0 %v232, 32
    %v237 = vpop.permute.xlu0 %236
    %238 = vrot.lane.b32.xlu0 %v233, 32
    %v239 = vpop.permute.xlu0 %238
    %v242 = vmul.f32 %v172, %v237
    %v243 = vmul.f32 %v173, %v239
    %246 = vrot.lane.b32.xlu0 %v242, 96
    %v247 = vpop.permute.xlu0 %246
    %248 = vrot.lane.b32.xlu0 %v243, 96
    %v249 = vpop.permute.xlu0 %248
    %v252 = vmul.f32 %v230, %v247
    %v253 = vmul.f32 %v231, %v249
    %v254 = vadd.f32 %v69, %v252
    %v255 = vadd.f32 %v70, %v253
    %256 = vst.msk [vmem:[#allocation7] sm:$0xff] %vm106, %v254
    %257 = vst.msk [vmem:[#allocation7 + $0x8] sm:$0xff] %vm106, %v255
    // Predicated region
    $region50: #{tpu_custom_call.1} parent=1 // pred_check
      _
    $region51: #{tpu_custom_call.1} parent=1 // pred_check_branch
      %259 = sbr.rel (0) target = $region53
    $region52: #{tpu_custom_call.1} parent=1 // pred_region
      %261 = vsyncadd [#allocation4], 0
      %s262 = sshll.u32 [#allocation7], 4
      %s263 = int_to_ptr.vmem [resolvable:$true] %s262
      %s264 = sshll.u32 %s10, 4
      %s265 = int_to_ptr.hbm [resolvable:$true] %s264
      %270 = dma.vmem_to_hbm [thread:$0]  %s263, 256, %s265, [#allocation4], 128, 128, 8
    $region53: #{tpu_custom_call.1} parent=1 // pred_fallthru
      _
    // Predicated region
    $region54: #{tpu_custom_call.1} parent=1 // pred_check
      _
    $region55: #{tpu_custom_call.1} parent=1 // pred_check_branch
      %272 = sbr.rel (0) target = $region57
    $region56: #{tpu_custom_call.1} parent=1 // pred_region
      %274 = dma.done [#allocation4], 256
    $region57: #{tpu_custom_call.1} parent=1 // pred_fallthru
      _
    %275 = vsyncpa [#allocation3], 1
    %276 = vsyncpa [#allocation6], 1
    %277 = vsyncpa [#allocation4], 1

</llo_original>
